<compile_context>
chip_gen: v7x
topology: tpu7x:2x2x1
jax: 0.10.0
libtpu: 0.0.40
codegen_flags: <defaults>
</compile_context>

<pallas_src>
import functools
import math

import jax
import jax.numpy as jnp
from jax.experimental import pallas as pl
from jax.experimental.pallas import tpu as pltpu

_LANES = 128


def _round_up(a, b):
    return (a + b - 1) // b * b


def _state_classifier_kernel(x_ref, w_ref, b_ref, mask_ref, o_ref):
    # Dropout = identity (eval mode).
    x = x_ref[...].astype(jnp.float32)

    # tanh-approximate GELU: runs on the EUP slot instead of a long VPU erf
    # polynomial (max |diff| vs exact erf GELU ~3e-3, inside bf16 noise here).
    g = jax.nn.gelu(x, approximate=True)

    # bf16 MXU matmul, f32 accumulation.  w_ref is pre-transposed [F_pad, C_pad].
    y = jnp.dot(g.astype(jnp.bfloat16), w_ref[...],
                preferred_element_type=jnp.float32)
    y = y + b_ref[...]                      # [1, C_pad] broadcasts over rows

    # masked_fill_(mask, -10000.0)
    o_ref[...] = jnp.where(mask_ref[...] != 0,
                           jnp.float32(-10000.0), y).astype(o_ref.dtype)


def prepare_state_classifier_params(weight, bias):
    """One-time parameter prep: weight [C, F] -> bf16 [F_pad, C_pad]; bias -> f32 [1, C_pad]."""
    c, f = weight.shape
    f_pad = _round_up(f, _LANES)
    c_pad = _round_up(c, _LANES)
    w_t = jnp.zeros((f_pad, c_pad), jnp.bfloat16)
    w_t = w_t.at[:f, :c].set(weight.T.astype(jnp.bfloat16))
    b = jnp.zeros((1, c_pad), jnp.float32).at[0, :c].set(bias.astype(jnp.float32))
    return w_t, b


@functools.partial(jax.jit, static_argnames=("num_classes", "tile_n"))
def state_classifier_forward(x, mask, w_t, b, *, num_classes, tile_n=256):
    """x: [N, F] float, mask: [N, num_classes] bool/int.  Returns f32 [N, num_classes]."""
    n, f = x.shape
    f_pad, c_pad = w_t.shape

    # Row tile: multiple of 32 (covers int8 / bf16 sublane packing), capped by N.
    tile_n = min(tile_n, _round_up(n, 32))
    n_pad = _round_up(n, tile_n)

    x_bf = x.astype(jnp.bfloat16)
    if (n_pad, f_pad) != (n, f):
        x_bf = jnp.zeros((n_pad, f_pad), jnp.bfloat16).at[:n, :f].set(x_bf)

    m_i8 = mask.astype(jnp.int8)
    if (n_pad, c_pad) != m_i8.shape:
        m_i8 = jnp.zeros((n_pad, c_pad), jnp.int8).at[:n, :num_classes].set(m_i8)

    out = pl.pallas_call(
        _state_classifier_kernel,
        out_shape=jax.ShapeDtypeStruct((n_pad, c_pad), jnp.float32),
        grid=(n_pad // tile_n,),
        in_specs=[
            pl.BlockSpec((tile_n, f_pad), lambda i: (i, 0)),   # x row tile (pipelined)
            pl.BlockSpec((f_pad, c_pad), lambda i: (0, 0)),    # weight, resident
            pl.BlockSpec((1, c_pad), lambda i: (0, 0)),        # bias, resident
            pl.BlockSpec((tile_n, c_pad), lambda i: (i, 0)),   # mask row tile
        ],
        out_specs=pl.BlockSpec((tile_n, c_pad), lambda i: (i, 0)),
        compiler_params=pltpu.CompilerParams(
            dimension_semantics=("parallel",),   # independent row tiles -> megacore
        ),
    )(x_bf, w_t, b, m_i8)
    return out[:n, :num_classes]


if __name__ == "__main__":
    key = jax.random.PRNGKey(0)
    k_x, k_w, k_b, k_m = jax.random.split(key, 4)

    batch, seq = 2, 8
    num_features, num_classes = 128, 9

    x = jax.random.normal(k_x, (batch, seq, num_features), dtype=jnp.float32)
    bound = 1.0 / math.sqrt(num_features)
    weight = jax.random.uniform(
        k_w, (num_classes, num_features), minval=-bound, maxval=bound, dtype=jnp.float32
    )
    bias = jax.random.uniform(
        k_b, (num_classes,), minval=-bound, maxval=bound, dtype=jnp.float32
    )
    mask = jax.random.bernoulli(k_m, p=0.3, shape=(batch, seq, num_classes))

    # Parameter prep done once (transpose / pad / bf16 cast), not per forward call.
    w_t_pad, b_pad = prepare_state_classifier_params(weight, bias)

    x2 = x.reshape(batch * seq, num_features)
    m2 = mask.reshape(batch * seq, num_classes)
    out = state_classifier_forward(x2, m2, w_t_pad, b_pad, num_classes=num_classes)
    out = jax.block_until_ready(out).reshape(batch, seq, num_classes)

    # Pure-JAX f32 reference (exact erf GELU, dropout identity in eval mode).
    g_ref = 0.5 * x * (1.0 + jax.lax.erf(x / jnp.sqrt(2.0)))
    y_ref = jnp.einsum("bsf,cf->bsc", g_ref, weight) + bias
    y_ref = jnp.where(mask, -10000.0, y_ref)

    err = float(jnp.max(jnp.abs(out - y_ref)))
    assert err < 5e-2, f"mismatch vs reference: max abs err {err}"
    print("KERNEL_OK")
</pallas_src>

<mosaic_0001>
module attributes {stable_mosaic.version = 11 : i64} {
  func.func @_state_classifier_kernel(%arg0: i32, %arg1: memref<32x128xbf16, #tpu.memory_space<vmem>>, %arg2: memref<128x128xbf16, #tpu.memory_space<vmem>>, %arg3: memref<1x128xf32, #tpu.memory_space<vmem>>, %arg4: memref<32x128xi8, #tpu.memory_space<vmem>>, %arg5: memref<32x128xf32, #tpu.memory_space<vmem>>) attributes {dimension_semantics = [#tpu.dimension_semantics<parallel>], iteration_bounds = array<i64: 1>, scalar_prefetch = 0 : i64, scratch_operands = 0 : i64, tpu.core_type = #tpu.core_type<tc>, window_params = [{transform_indices = @transform_0, window_bounds = array<i64: 32, 128>}, {pipeline_mode = #tpu.pipeline_mode<synchronous>, transform_indices = @transform_1, window_bounds = array<i64: 128, 128>}, {pipeline_mode = #tpu.pipeline_mode<synchronous>, transform_indices = @transform_2, window_bounds = array<i64: 1, 128>}, {transform_indices = @transform_3, window_bounds = array<i64: 32, 128>}, {transform_indices = @transform_4, window_bounds = array<i64: 32, 128>}]} {
    %c0 = arith.constant 0 : index
    %c0_0 = arith.constant 0 : index
    %0 = vector.load %arg1[%c0, %c0_0] : memref<32x128xbf16, #tpu.memory_space<vmem>>, vector<32x128xbf16>
    %1 = arith.extf %0 : vector<32x128xbf16> to vector<32x128xf32>
    %2 = arith.mulf %1, %1 : vector<32x128xf32>
    %3 = arith.mulf %1, %2 : vector<32x128xf32>
    %cst = arith.constant 4.471500e-02 : f32
    %4 = vector.broadcast %cst : f32 to vector<32x128xf32>
    %5 = arith.mulf %4, %3 : vector<32x128xf32>
    %6 = arith.addf %1, %5 : vector<32x128xf32>
    %cst_1 = arith.constant 0.797884583 : f32
    %7 = vector.broadcast %cst_1 : f32 to vector<32x128xf32>
    %8 = arith.mulf %7, %6 : vector<32x128xf32>
    %9 = math.tanh %8 : vector<32x128xf32>
    %cst_2 = arith.constant 1.000000e+00 : f32
    %10 = vector.broadcast %cst_2 : f32 to vector<32x128xf32>
    %11 = arith.addf %10, %9 : vector<32x128xf32>
    %cst_3 = arith.constant 5.000000e-01 : f32
    %12 = vector.broadcast %cst_3 : f32 to vector<32x128xf32>
    %13 = arith.mulf %12, %11 : vector<32x128xf32>
    %14 = arith.mulf %1, %13 : vector<32x128xf32>
    %15 = arith.truncf %14 : vector<32x128xf32> to vector<32x128xbf16>
    %c0_4 = arith.constant 0 : index
    %c0_5 = arith.constant 0 : index
    %16 = vector.load %arg2[%c0_4, %c0_5] : memref<128x128xbf16, #tpu.memory_space<vmem>>, vector<128x128xbf16>
    %cst_6 = arith.constant dense<0.000000e+00> : vector<32x128xf32>
    %17 = tpu.matmul %15, %16, %cst_6 {dimension_numbers = #tpu.dot_dimension_numbers<[1], [0], [0], [1], [0, 0, 1, 1], [], []>} : vector<32x128xbf16>, vector<128x128xbf16>, vector<32x128xf32> -> vector<32x128xf32>
    %c0_7 = arith.constant 0 : index
    %c0_8 = arith.constant 0 : index
    %18 = vector.load %arg3[%c0_7, %c0_8] : memref<1x128xf32, #tpu.memory_space<vmem>>, vector<1x128xf32>
    %19 = vector.broadcast %18 : vector<1x128xf32> to vector<32x128xf32>
    %20 = arith.addf %17, %19 : vector<32x128xf32>
    %c0_9 = arith.constant 0 : index
    %c0_10 = arith.constant 0 : index
    %21 = vector.load %arg4[%c0_9, %c0_10] : memref<32x128xi8, #tpu.memory_space<vmem>>, vector<32x128xi8>
    %c0_i8 = arith.constant 0 : i8
    %22 = vector.broadcast %c0_i8 : i8 to vector<32x128xi8>
    %23 = arith.cmpi ne, %21, %22 : vector<32x128xi8>
    %cst_11 = arith.constant -1.000000e+04 : f32
    %24 = vector.broadcast %cst_11 : f32 to vector<32x128xf32>
    %25 = arith.select %23, %24, %20 : vector<32x128xi1>, vector<32x128xf32>
    %c0_12 = arith.constant 0 : index
    %c0_13 = arith.constant 0 : index
    %26 = vector.load %arg5[%c0_12, %c0_13] : memref<32x128xf32, #tpu.memory_space<vmem>>, vector<32x128xf32>
    tpu.vector_store %arg5[%c0_12, %c0_13], %25 {strides = array<i32>} : memref<32x128xf32, #tpu.memory_space<vmem>>, vector<32x128xf32>,
    return
  }
  func.func @transform_0(%arg0: i32) -> (i32, i32) {
    %c0_i32 = arith.constant 0 : i32
    %c0_i32_0 = arith.constant 0 : i32
    return %arg0, %c0_i32 : i32, i32
  }
  func.func @transform_1(%arg0: i32) -> (i32, i32) {
    %c0_i32 = arith.constant 0 : i32
    %c0_i32_0 = arith.constant 0 : i32
    %c0_i32_1 = arith.constant 0 : i32
    return %c0_i32, %c0_i32_0 : i32, i32
  }
  func.func @transform_2(%arg0: i32) -> (i32, i32) {
    %c0_i32 = arith.constant 0 : i32
    %c0_i32_0 = arith.constant 0 : i32
    %c0_i32_1 = arith.constant 0 : i32
    return %c0_i32, %c0_i32_0 : i32, i32
  }
  func.func @transform_3(%arg0: i32) -> (i32, i32) {
    %c0_i32 = arith.constant 0 : i32
    %c0_i32_0 = arith.constant 0 : i32
    return %arg0, %c0_i32 : i32, i32
  }
  func.func @transform_4(%arg0: i32) -> (i32, i32) {
    %c0_i32 = arith.constant 0 : i32
    %c0_i32_0 = arith.constant 0 : i32
    return %arg0, %c0_i32 : i32, i32
  }
}

</mosaic_0001>

<llo_original>
// kernel: state_classifier_forward.1
$region0: #{state_classifier_forward.1}
  #allocation0 [shape = 'u32[]', space=smem, size = 0x4, offset = 0x4, fixed_abs, tag = 'smem constant byte address 0x4 - core index']
  #allocation1 [shape = 'u32[144,128]{1,0:T(1,128)}', space=vmem, size = 0x12000, scoped, tag = 'internal scratch']
  %s0 = inlined_call_operand.vmem [shape: bf16[32,128], index: 0, kind: input, shape index: {}]
  %s1 = inlined_call_operand.vmem [shape: bf16[128,128], index: 1, kind: input, shape index: {}]
  %s2 = inlined_call_operand.vmem [shape: f32[1,128], index: 2, kind: input, shape index: {}]
  %s3 = inlined_call_operand.vmem [shape: s8[32,128], index: 3, kind: input, shape index: {}]
  %s4 = inlined_call_operand.vmem [shape: f32[32,128], index: 4, kind: output, shape index: {}]
  %s5 = sld [smem:[#allocation0]]
  $region26: #{state_classifier_forward.1} parent=0
    _
  %s7 = ssub.s32 1, %s5
  %s8 = scalar_select 0, %s7, %s5
  // Predicated region
  $region2: #{state_classifier_forward.1} parent=0 // pred_check
    _
  $region3: #{state_classifier_forward.1} parent=0 // pred_check_branch
    %10 = sbr.rel (0) target = $region5
  $region4: #{state_classifier_forward.1} parent=0 // pred_region
    _
  $region5: #{state_classifier_forward.1} parent=0 // pred_fallthru
    _
  // Predicated region
  $region6: #{state_classifier_forward.1} parent=0 // pred_check
    _
  $region7: #{state_classifier_forward.1} parent=0 // pred_check_branch
    %12 = sbr.rel (0) target = $region9
  $region8: #{state_classifier_forward.1} parent=0 // pred_region
    _
  $region9: #{state_classifier_forward.1} parent=0 // pred_fallthru
    _
  // Predicated region
  $region10: #{state_classifier_forward.1} parent=0 // pred_check
    _
  $region11: #{state_classifier_forward.1} parent=0 // pred_check_branch
    %14 = sbr.rel (0) target = $region13
  $region12: #{state_classifier_forward.1} parent=0 // pred_region
    _
  $region13: #{state_classifier_forward.1} parent=0 // pred_fallthru
    _
  // Predicated region
  $region14: #{state_classifier_forward.1} parent=0 // pred_check
    _
  $region15: #{state_classifier_forward.1} parent=0 // pred_check_branch
    %16 = sbr.rel (0) target = $region17
  $region16: #{state_classifier_forward.1} parent=0 // pred_region
    _
  $region17: #{state_classifier_forward.1} parent=0 // pred_fallthru
    _
  %v20 = vld [vmem:[%s0] sm:$0xf]
  %v21 = vld [vmem:[%s0 + $0x4] sm:$0xf]
  %v22 = vld [vmem:[%s0 + $0x8] sm:$0xf]
  %v23 = vld [vmem:[%s0 + $0xc] sm:$0xf]
  %v24 = vunpack.c.l.bf16 %v20
  %v25 = vunpack.c.l.bf16 %v21
  %v26 = vunpack.c.l.bf16 %v22
  %v27 = vunpack.c.l.bf16 %v23
  %v28 = vmul.f32 %v24, %v24
  %v29 = vmul.f32 %v25, %v25
  %v30 = vmul.f32 %v26, %v26
  %v31 = vmul.f32 %v27, %v27
  %v32 = vmul.f32 %v24, %v28
  %v33 = vmul.f32 %v25, %v29
  %v34 = vmul.f32 %v26, %v30
  %v35 = vmul.f32 %v27, %v31
  %v36 = vmul.f32 %v32, 0.044715
  %v37 = vmul.f32 %v33, 0.044715
  %v38 = vmul.f32 %v34, 0.044715
  %v39 = vmul.f32 %v35, 0.044715
  %v40 = vadd.f32 %v24, %v36
  %v41 = vadd.f32 %v25, %v37
  %v42 = vadd.f32 %v26, %v38
  %v43 = vadd.f32 %v27, %v39
  %v44 = vmul.f32 %v40, 0.7978846
  %v45 = vmul.f32 %v41, 0.7978846
  %v46 = vmul.f32 %v42, 0.7978846
  %v47 = vmul.f32 %v43, 0.7978846
  %v48 = vtanh.pop %v44
  %v49 = vtanh.pop %v45
  %v50 = vtanh.pop %v46
  %v51 = vtanh.pop %v47
  %v52 = vadd.f32 %v48, 1.0
  %v53 = vadd.f32 %v49, 1.0
  %v54 = vadd.f32 %v50, 1.0
  %v55 = vadd.f32 %v51, 1.0
  %v56 = vmul.f32 %v52, 0.5
  %v57 = vmul.f32 %v53, 0.5
  %v58 = vmul.f32 %v54, 0.5
  %v59 = vmul.f32 %v55, 0.5
  %v60 = vmul.f32 %v24, %v56
  %v61 = vmul.f32 %v25, %v57
  %v62 = vmul.f32 %v26, %v58
  %v63 = vmul.f32 %v27, %v59
  %v64 = vpack.c.bf16 %v61, %v60
  %v65 = vpack.c.bf16 %v63, %v62
  %v66 = vld [vmem:[%s1] sm:$0xf]
  %v67 = vld [vmem:[%s1 + $0x4] sm:$0xf]
  %v68 = vld [vmem:[%s1 + $0x8] sm:$0xf]
  %v69 = vld [vmem:[%s1 + $0xc] sm:$0xf]
  %v70 = vld [vmem:[%s1 + $0x10] sm:$0xf]
  %v71 = vld [vmem:[%s1 + $0x14] sm:$0xf]
  %v72 = vld [vmem:[%s1 + $0x18] sm:$0xf]
  %v73 = vld [vmem:[%s1 + $0x1c] sm:$0xf]
  %v74 = vld [vmem:[%s1 + $0x20] sm:$0xf]
  %v75 = vld [vmem:[%s1 + $0x24] sm:$0xf]
  %v76 = vld [vmem:[%s1 + $0x28] sm:$0xf]
  %v77 = vld [vmem:[%s1 + $0x2c] sm:$0xf]
  %v78 = vld [vmem:[%s1 + $0x30] sm:$0xf]
  %v79 = vld [vmem:[%s1 + $0x34] sm:$0xf]
  %v80 = vld [vmem:[%s1 + $0x38] sm:$0xf]
  %v81 = vld [vmem:[%s1 + $0x3c] sm:$0xf]
  %v82 = vld [vmem:[%s2] sm:$0x1]
  %v84 = vlaneseq
  %v85 = vshrl.u32 %v84, 7
  %v86 = vsub.s32 0, %v85
  %v87 = vrot.slane %v82, %v86
  %v105 = vunpack.c.l.b16 %v66
  %v106 = vunpack.c.l.b16 %v67
  %v107 = vunpack.c.l.b16 %v68
  %v108 = vunpack.c.l.b16 %v69
  %v109 = vunpack.c.l.b16 %v70
  %v110 = vunpack.c.l.b16 %v71
  %v111 = vunpack.c.l.b16 %v72
  %v112 = vunpack.c.l.b16 %v73
  %v113 = vunpack.c.l.b16 %v74
  %v114 = vunpack.c.l.b16 %v75
  %v115 = vunpack.c.l.b16 %v76
  %v116 = vunpack.c.l.b16 %v77
  %v117 = vunpack.c.l.b16 %v78
  %v118 = vunpack.c.l.b16 %v79
  %v119 = vunpack.c.l.b16 %v80
  %v120 = vunpack.c.l.b16 %v81
  %v121 = vpack.c.b16 %v106, %v105
  %v122 = vpack.c.b16 %v108, %v107
  %v123 = vpack.c.b16 %v110, %v109
  %v124 = vpack.c.b16 %v112, %v111
  %v125 = vpack.c.b16 %v114, %v113
  %v126 = vpack.c.b16 %v116, %v115
  %v127 = vpack.c.b16 %v118, %v117
  %v128 = vpack.c.b16 %v120, %v119
  %137 = vmatprep.subr.bf16.mxu0 0
  %138 = vmatpush1.bf16.msra.mxu0 %v121
  %139 = vmatprep.subr.bf16.mxu0 0
  %140 = vmatpush1.bf16.msra.mxu0 %v122
  %141 = vmatprep.subr.bf16.mxu0 0
  %142 = vmatpush1.bf16.msra.mxu0 %v123
  %143 = vmatprep.subr.bf16.mxu0 0
  %144 = vmatpush1.bf16.msra.mxu0 %v124
  %145 = vmatprep.subr.bf16.mxu0 0
  %146 = vmatpush1.bf16.msra.mxu0 %v125
  %147 = vmatprep.subr.bf16.mxu0 0
  %148 = vmatpush1.bf16.msra.mxu0 %v126
  %149 = vmatprep.subr.bf16.mxu0 0
  %150 = vmatpush1.bf16.msra.mxu0 %v127
  %151 = vmatprep.subr.bf16.mxu0 0
  %152 = vmatpush1.bf16.msra.mxu0 %v128
  %153 = vmatprep.subr.bf16.mxu0 0
  %154 = vmatpush1.bf16.msra.mxu0 0
  %155 = vmatprep.subr.bf16.mxu0 0
  %156 = vmatpush1.bf16.msra.mxu0 0
  %157 = vmatprep.subr.bf16.mxu0 0
  %158 = vmatpush1.bf16.msra.mxu0 0
  %159 = vmatprep.subr.bf16.mxu0 0
  %160 = vmatpush1.bf16.msra.mxu0 0
  %161 = vmatprep.subr.bf16.mxu0 0
  %162 = vmatpush1.bf16.msra.mxu0 0
  %163 = vmatprep.subr.bf16.mxu0 0
  %164 = vmatpush1.bf16.msra.mxu0 0
  %165 = vmatprep.subr.bf16.mxu0 0
  %166 = vmatpush1.bf16.msra.mxu0 0
  %167 = vmatprep.subr.bf16.mxu0 0
  %168 = vmatpush1.bf16.msra.mxu0 0
  %169 = vmatprep.mubr.bf16.mxu0 0
  %170 = vmatmul.mubr.bf16.gmra.mrb[0].mxu0 %v64
  %v171 = vpop.f32.mrb[0].mxu0
  %v172 = vadd.f32 %v87, %v171
  %v173 = vpop.f32.mrb[0].mxu0
  %v174 = vpop.f32.mrb[0].mxu0
  %v175 = vadd.f32 %v87, %v174
  %v176 = vpop.f32.mrb[0].mxu0
  %177 = vmatprep.mubr.bf16.mxu0 0
  %178 = vmatmul.mubr.bf16.gmra.mrb[0].mxu0 %v65
  %v179 = vpop.f32.mrb[0].mxu0
  %v180 = vadd.f32 %v87, %v179
  %v181 = vpop.f32.mrb[0].mxu0
  %v182 = vpop.f32.mrb[0].mxu0
  %v183 = vadd.f32 %v87, %v182
  %v184 = vpop.f32.mrb[0].mxu0
  %185 = vdwg.mxu0
  %v186 = vld [vmem:[%s3] sm:$0xff]
  %vm187 = vnez %v186
  %v188 = vsel %vm187, 16843009, 0
  %v189 = vunpack.c.0.s8 %v188
  %v190 = vunpack.c.1.s8 %v188
  %v191 = vunpack.c.2.s8 %v188
  %v192 = vunpack.c.3.s8 %v188
  %v193 = vpack.c.b16 %v189, %v189
  %v194 = vpack.c.b8 %v193, %v193
  %v195 = vpack.c.b16 %v190, %v190
  %v196 = vpack.c.b8 %v195, %v195
  %v197 = vpack.c.b16 %v191, %v191
  %v198 = vpack.c.b8 %v197, %v197
  %v199 = vpack.c.b16 %v192, %v192
  %v200 = vpack.c.b8 %v199, %v199
  %vm201 = vnez %v194
  %vm202 = vnez %v196
  %vm203 = vnez %v198
  %vm204 = vnez %v200
  %v205 = vsel %vm201, 16843009, 0
  %v206 = vsel %vm202, 16843009, 0
  %v207 = vsel %vm203, 16843009, 0
  %v208 = vsel %vm204, 16843009, 0
  %v209 = vunpack.c.0.s8 %v205
  %v210 = vunpack.c.0.s8 %v206
  %v211 = vunpack.c.0.s8 %v207
  %v212 = vunpack.c.0.s8 %v208
  %vm213 = vcmp.ne.s32.totalorder %v209, 0
  %vm214 = vcmp.ne.s32.totalorder %v210, 0
  %vm215 = vcmp.ne.s32.totalorder %v211, 0
  %vm216 = vcmp.ne.s32.totalorder %v212, 0
  %v217 = vsel %vm213, -10000.0, %v172
  %v218 = vsel %vm214, -10000.0, %v175
  %v219 = vsel %vm215, -10000.0, %v180
  %v220 = vsel %vm216, -10000.0, %v183
  %221 = vst [vmem:[%s4] sm:$0xff] %v217
  %222 = vst [vmem:[%s4 + $0x8] sm:$0xff] %v218
  %223 = vst [vmem:[%s4 + $0x10] sm:$0xff] %v219
  %224 = vst [vmem:[%s4 + $0x18] sm:$0xff] %v220
  // Predicated region
  $region18: #{state_classifier_forward.1} parent=0 // pred_check
    _
  $region19: #{state_classifier_forward.1} parent=0 // pred_check_branch
    %226 = sbr.rel (0) target = $region21
  $region20: #{state_classifier_forward.1} parent=0 // pred_region
    _
  $region21: #{state_classifier_forward.1} parent=0 // pred_fallthru
    _
  // Predicated region
  $region22: #{state_classifier_forward.1} parent=0 // pred_check
    _
  $region23: #{state_classifier_forward.1} parent=0 // pred_check_branch
    %228 = sbr.rel (0) target = $region25
  $region24: #{state_classifier_forward.1} parent=0 // pred_region
    _
  $region25: #{state_classifier_forward.1} parent=0 // pred_fallthru
    _

</llo_original>
